<compile_context>
chip_gen: v6e
topology: v6e:2x2x1
jax: 0.10.0
libtpu: 0.0.40
codegen_flags: <defaults>
</compile_context>

<pallas_src>
import functools

import jax
import jax.numpy as jnp
from jax.experimental import pallas as pl
from jax.experimental.pallas import tpu as pltpu

LANE_PAD = 128  # pad all layer K/N dims to this many lanes (full vregs, dense stores)


# ----------------------------- Fused Pallas kernel -----------------------------

def _make_fused_kernel(n_cond_rest, n_nade):
    """Fused forward. Ref order:
         piano, orch_past, orch_t, mask   (each (B, 128) f32, lane-padded)
         w_slab (L, 128, 128) bf16        L = 4 + n_cond_rest + n_nade
         b_slab (Lb, 1, 128) f32          Lb = 3 + n_cond_rest + n_nade
         cond_out (B, 128) f32, nade_out (2B, 128) f32
       Weight-slab layout: [wp, wo, wc0_piano, wc0_orch, cond_rest..., nade...]
       Bias-slab layout:   [bp, bo, bc0,        cond_rest..., nade...]
    """

    def kernel(piano_ref, orch_past_ref, orch_t_ref, mask_ref,
               w_ref, b_ref, cond_out_ref, nade_out_ref):

        def mm(x, layer):
            # MXU matmul: bf16 operands, f32 accumulation. `layer` is static.
            return jnp.dot(x.astype(jnp.bfloat16), w_ref[layer],
                           preferred_element_type=jnp.float32)

        # ---- embeddings (stand-ins for data_processor.embed_*) ----
        # TODO(synk): real embedding is defined by the external data_processor;
        # modelled here as linear projections.
        p_embed = mm(piano_ref[...], 0) + b_ref[0]
        o_embed = mm(orch_past_ref[...], 1) + b_ref[1]

        # ---- condition encoder ----
        # First layer: split matmul replaces cat((p_embed, o_past_embed), dim=1).
        h = jnp.maximum(mm(p_embed, 2) + mm(o_embed, 3) + b_ref[2], 0.0)
        wi, bi = 4, 3
        for l in range(n_cond_rest):
            h = jnp.maximum(mm(h, wi + l) + b_ref[bi + l], 0.0)
        cond_out_ref[...] = h.astype(cond_out_ref.dtype)       # dense 128-lane store
        wi += n_cond_rest
        bi += n_cond_rest

        # ---- NADE stack ----
        # cat((orchestra_t, mask*orchestra_t), dim=0) -> ONE stacked (2B, 128)
        # operand through a single layer chain (halves MXU/VPU work vs 2 chains).
        o_t = orch_t_ref[...]
        masked = mask_ref[...] * o_t                            # elementwise in f32
        x = jnp.concatenate([o_t, masked], axis=0)              # (2B, 128)
        for l in range(n_nade):
            x = jnp.maximum(mm(x, wi + l) + b_ref[bi + l], 0.0)
        nade_out_ref[...] = x.astype(nade_out_ref.dtype)        # dense 128-lane store

    return kernel


# ----------------------------- One-time parameter packing -----------------------------

def prepare_params(params, lane_pad=LANE_PAD):
    """Pad / cast / split / pack weights ONCE, outside the per-call path."""
    wp, bp = params["embed_piano"]
    wo, bo = params["embed_orch"]
    (wc0, bc0), *cond_rest = params["condition_encoder"]
    nade = params["nade"]
    piano_emb = wp.shape[1]
    wc0_p, wc0_o = wc0[:piano_emb, :], wc0[piano_emb:, :]       # pre-split (no kernel concat)

    def pad_w(w):
        k, n = w.shape
        assert k <= lane_pad and n <= lane_pad
        return jnp.pad(w, ((0, lane_pad - k), (0, lane_pad - n))).astype(jnp.bfloat16)

    def pad_b(b):
        b = b.reshape(1, -1)
        return jnp.pad(b, ((0, 0), (0, lane_pad - b.shape[1])))

    w_list = [wp, wo, wc0_p, wc0_o] + [w for w, _ in cond_rest] + [w for w, _ in nade]
    b_list = [bp, bo, bc0] + [b for _, b in cond_rest] + [b for _, b in nade]

    w_slab = jnp.stack([pad_w(w) for w in w_list])   # (L, 128, 128) bf16
    b_slab = jnp.stack([pad_b(b) for b in b_list])   # (Lb, 1, 128) f32

    meta = dict(n_cond_rest=len(cond_rest), n_nade=len(nade),
                cond_out_dim=params["condition_encoder"][-1][0].shape[1],
                nade_out_dim=nade[-1][0].shape[1], lane_pad=lane_pad)
    return w_slab, b_slab, meta


# ----------------------------- Fused forward wrapper -----------------------------

def nade_mlp_forward_fused(w_slab, b_slab, piano, orchestra_past, orchestra_t, mask,
                           *, n_cond_rest, n_nade, lane_pad=LANE_PAD):
    """Single pallas_call; all weights/activations resident in VMEM.

    Returns lane-padded outputs: (B, lane_pad) and (2B, lane_pad); valid
    columns are [:cond_out_dim] / [:nade_out_dim].
    """
    B = piano.shape[0]

    def padx(x):  # tiny per-call pads of the raw activations (cheap XLA ops)
        return jnp.pad(x, ((0, 0), (0, lane_pad - x.shape[1])))

    inputs = [padx(piano), padx(orchestra_past), padx(orchestra_t), padx(mask),
              w_slab, b_slab]

    def full_spec(shape):
        zeros = (0,) * len(shape)
        return pl.BlockSpec(shape, lambda i, z=zeros: z)

    kernel = _make_fused_kernel(n_cond_rest, n_nade)

    cond_out, nade_out = pl.pallas_call(
        kernel,
        out_shape=(jax.ShapeDtypeStruct((B, lane_pad), jnp.float32),
                   jax.ShapeDtypeStruct((2 * B, lane_pad), jnp.float32)),
        grid=(1,),
        in_specs=[full_spec(a.shape) for a in inputs],
        out_specs=[full_spec((B, lane_pad)), full_spec((2 * B, lane_pad))],
        compiler_params=pltpu.CompilerParams(
            dimension_semantics=("arbitrary",)),
    )(*inputs)
    return cond_out, nade_out


# ----------------------------- Pure-JAX reference -----------------------------

def nade_mlp_forward_reference(params, piano, orchestra_past, orchestra_t, mask):
    def linear(x, w, b, relu):
        y = x @ w + b
        return jnp.maximum(y, 0.0) if relu else y

    p_embed = linear(piano, *params["embed_piano"], relu=False)
    o_embed = linear(orchestra_past, *params["embed_orch"], relu=False)
    h = jnp.concatenate([p_embed, o_embed], axis=1)
    for w, b in params["condition_encoder"]:
        h = linear(h, w, b, relu=True)
    cond = h
    x = jnp.concatenate([orchestra_t, mask * orchestra_t], axis=0)
    for w, b in params["nade"]:
        x = linear(x, w, b, relu=True)
    return {"condition_encoded": cond, "nade_encoded": x}


# ----------------------------- Parameter setup -----------------------------

def init_linear(key, d_in, d_out):
    kw, kb = jax.random.split(key)
    scale = 1.0 / jnp.sqrt(jnp.float32(d_in))
    w = jax.random.uniform(kw, (d_in, d_out), jnp.float32, -scale, scale)
    b = jax.random.uniform(kb, (1, d_out), jnp.float32, -scale, scale)
    return w, b


def init_ffnn(key, dims):
    """dims = [d0, d1, ..., dk] -> k Linear layers (ReLU; dropout=identity in eval)."""
    keys = jax.random.split(key, len(dims) - 1)
    return [init_linear(k, d_in, d_out)
            for k, d_in, d_out in zip(keys, dims[:-1], dims[1:])]


# ----------------------------- Driver -----------------------------

if __name__ == "__main__":
    key = jax.random.PRNGKey(0)

    # Small shapes consistent with the module's __init__:
    B = 8
    piano_dim = 24
    orch_past_dim = 40
    piano_emb = 32
    orch_past_emb = 32
    concatenated_embedded_inputs_dim = piano_emb + orch_past_emb   # 64
    orchestra_dim = 32
    layers_condition = [64, 32]
    layers_NADE = [64, 32]

    k_params, k_p, k_op, k_ot, k_m = jax.random.split(key, 5)
    k_ep, k_eo, k_cond, k_nade = jax.random.split(k_params, 4)

    params = {
        "embed_piano": init_linear(k_ep, piano_dim, piano_emb),
        "embed_orch": init_linear(k_eo, orch_past_dim, orch_past_emb),
        "condition_encoder": init_ffnn(
            k_cond, [concatenated_embedded_inputs_dim] + layers_condition),
        "nade": init_ffnn(k_nade, [orchestra_dim] + layers_NADE),
    }

    piano = jax.random.normal(k_p, (B, piano_dim), jnp.float32)
    orchestra_past = jax.random.normal(k_op, (B, orch_past_dim), jnp.float32)
    orchestra_t = jax.random.normal(k_ot, (B, orchestra_dim), jnp.float32)
    mask = (jax.random.uniform(k_m, (B, orchestra_dim)) > 0.5).astype(jnp.float32)

    # One-time packing (pad/cast/split/stack) — NOT in the per-call path.
    w_slab, b_slab, meta = prepare_params(params)
    w_slab, b_slab = jax.device_put(w_slab), jax.device_put(b_slab)

    fwd = jax.jit(functools.partial(nade_mlp_forward_fused,
                                    n_cond_rest=meta["n_cond_rest"],
                                    n_nade=meta["n_nade"],
                                    lane_pad=meta["lane_pad"]))
    cond_pad, nade_pad = fwd(w_slab, b_slab, piano, orchestra_past, orchestra_t, mask)
    jax.block_until_ready((cond_pad, nade_pad))

    # Lane-padded kernel outputs; valid columns are the true layer widths.
    cond = cond_pad[:, :meta["cond_out_dim"]]
    nade = nade_pad[:, :meta["nade_out_dim"]]

    assert cond.shape == (B, layers_condition[-1])
    assert nade.shape == (2 * B, layers_NADE[-1])

    # Numerical check against pure-JAX f32 reference (loose tol: bf16 matmuls, intentional).
    ref = nade_mlp_forward_reference(params, piano, orchestra_past, orchestra_t, mask)
    ok = bool(jnp.allclose(cond, ref["condition_encoded"], rtol=5e-2, atol=5e-2)) and \
         bool(jnp.allclose(nade, ref["nade_encoded"], rtol=5e-2, atol=5e-2))
    assert ok, "fused Pallas forward mismatches pure-JAX reference"

    # Padded lanes should be exactly zero (zero weights/bias -> relu(0)=0).
    assert bool(jnp.all(cond_pad[:, meta["cond_out_dim"]:] == 0.0))
    assert bool(jnp.all(nade_pad[:, meta["nade_out_dim"]:] == 0.0))

    print("KERNEL_OK")
</pallas_src>

<mosaic_0001>
module attributes {stable_mosaic.version = 11 : i64} {
  func.func @kernel(%arg0: i32, %arg1: memref<8x128xf32, #tpu.memory_space<vmem>>, %arg2: memref<8x128xf32, #tpu.memory_space<vmem>>, %arg3: memref<8x128xf32, #tpu.memory_space<vmem>>, %arg4: memref<8x128xf32, #tpu.memory_space<vmem>>, %arg5: memref<7x128x128xbf16, #tpu.memory_space<vmem>>, %arg6: memref<6x1x128xf32, #tpu.memory_space<vmem>>, %arg7: memref<8x128xf32, #tpu.memory_space<vmem>>, %arg8: memref<16x128xf32, #tpu.memory_space<vmem>>) attributes {dimension_semantics = [#tpu.dimension_semantics<arbitrary>], iteration_bounds = array<i64: 1>, scalar_prefetch = 0 : i64, scratch_operands = 0 : i64, tpu.core_type = #tpu.core_type<tc>, window_params = [{pipeline_mode = #tpu.pipeline_mode<synchronous>, transform_indices = @transform_0, window_bounds = array<i64: 8, 128>}, {pipeline_mode = #tpu.pipeline_mode<synchronous>, transform_indices = @transform_1, window_bounds = array<i64: 8, 128>}, {pipeline_mode = #tpu.pipeline_mode<synchronous>, transform_indices = @transform_2, window_bounds = array<i64: 8, 128>}, {pipeline_mode = #tpu.pipeline_mode<synchronous>, transform_indices = @transform_3, window_bounds = array<i64: 8, 128>}, {pipeline_mode = #tpu.pipeline_mode<synchronous>, transform_indices = @transform_4, window_bounds = array<i64: 7, 128, 128>}, {pipeline_mode = #tpu.pipeline_mode<synchronous>, transform_indices = @transform_5, window_bounds = array<i64: 6, 1, 128>}, {pipeline_mode = #tpu.pipeline_mode<synchronous>, transform_indices = @transform_6, window_bounds = array<i64: 8, 128>}, {pipeline_mode = #tpu.pipeline_mode<synchronous>, transform_indices = @transform_7, window_bounds = array<i64: 16, 128>}]} {
    %c0 = arith.constant 0 : index
    %c0_0 = arith.constant 0 : index
    %0 = vector.load %arg1[%c0, %c0_0] : memref<8x128xf32, #tpu.memory_space<vmem>>, vector<8x128xf32>
    %1 = arith.truncf %0 : vector<8x128xf32> to vector<8x128xbf16>
    %c0_1 = arith.constant 0 : index
    %c0_2 = arith.constant 0 : index
    %c0_3 = arith.constant 0 : index
    %2 = vector.load %arg5[%c0_1, %c0_2, %c0_3] : memref<7x128x128xbf16, #tpu.memory_space<vmem>>, vector<1x128x128xbf16>
    %3 = vector.shape_cast %2 : vector<1x128x128xbf16> to vector<128x128xbf16>
    %cst = arith.constant dense<0.000000e+00> : vector<8x128xf32>
    %4 = tpu.matmul %1, %3, %cst {dimension_numbers = #tpu.dot_dimension_numbers<[1], [0], [0], [1], [0, 0, 1, 1], [], []>} : vector<8x128xbf16>, vector<128x128xbf16>, vector<8x128xf32> -> vector<8x128xf32>
    %c0_4 = arith.constant 0 : index
    %c0_5 = arith.constant 0 : index
    %c0_6 = arith.constant 0 : index
    %5 = vector.load %arg6[%c0_4, %c0_5, %c0_6] : memref<6x1x128xf32, #tpu.memory_space<vmem>>, vector<1x1x128xf32>
    %6 = vector.shape_cast %5 : vector<1x1x128xf32> to vector<1x128xf32>
    %7 = vector.broadcast %6 : vector<1x128xf32> to vector<8x128xf32>
    %8 = arith.addf %4, %7 : vector<8x128xf32>
    %c0_7 = arith.constant 0 : index
    %c0_8 = arith.constant 0 : index
    %9 = vector.load %arg2[%c0_7, %c0_8] : memref<8x128xf32, #tpu.memory_space<vmem>>, vector<8x128xf32>
    %10 = arith.truncf %9 : vector<8x128xf32> to vector<8x128xbf16>
    %c1 = arith.constant 1 : index
    %c0_9 = arith.constant 0 : index
    %c0_10 = arith.constant 0 : index
    %11 = vector.load %arg5[%c1, %c0_9, %c0_10] : memref<7x128x128xbf16, #tpu.memory_space<vmem>>, vector<1x128x128xbf16>
    %12 = vector.shape_cast %11 : vector<1x128x128xbf16> to vector<128x128xbf16>
    %cst_11 = arith.constant dense<0.000000e+00> : vector<8x128xf32>
    %13 = tpu.matmul %10, %12, %cst_11 {dimension_numbers = #tpu.dot_dimension_numbers<[1], [0], [0], [1], [0, 0, 1, 1], [], []>} : vector<8x128xbf16>, vector<128x128xbf16>, vector<8x128xf32> -> vector<8x128xf32>
    %c1_12 = arith.constant 1 : index
    %c0_13 = arith.constant 0 : index
    %c0_14 = arith.constant 0 : index
    %14 = vector.load %arg6[%c1_12, %c0_13, %c0_14] : memref<6x1x128xf32, #tpu.memory_space<vmem>>, vector<1x1x128xf32>
    %15 = vector.shape_cast %14 : vector<1x1x128xf32> to vector<1x128xf32>
    %16 = vector.broadcast %15 : vector<1x128xf32> to vector<8x128xf32>
    %17 = arith.addf %13, %16 : vector<8x128xf32>
    %18 = arith.truncf %8 : vector<8x128xf32> to vector<8x128xbf16>
    %c2 = arith.constant 2 : index
    %c0_15 = arith.constant 0 : index
    %c0_16 = arith.constant 0 : index
    %19 = vector.load %arg5[%c2, %c0_15, %c0_16] : memref<7x128x128xbf16, #tpu.memory_space<vmem>>, vector<1x128x128xbf16>
    %20 = vector.shape_cast %19 : vector<1x128x128xbf16> to vector<128x128xbf16>
    %cst_17 = arith.constant dense<0.000000e+00> : vector<8x128xf32>
    %21 = tpu.matmul %18, %20, %cst_17 {dimension_numbers = #tpu.dot_dimension_numbers<[1], [0], [0], [1], [0, 0, 1, 1], [], []>} : vector<8x128xbf16>, vector<128x128xbf16>, vector<8x128xf32> -> vector<8x128xf32>
    %22 = arith.truncf %17 : vector<8x128xf32> to vector<8x128xbf16>
    %c3 = arith.constant 3 : index
    %c0_18 = arith.constant 0 : index
    %c0_19 = arith.constant 0 : index
    %23 = vector.load %arg5[%c3, %c0_18, %c0_19] : memref<7x128x128xbf16, #tpu.memory_space<vmem>>, vector<1x128x128xbf16>
    %24 = vector.shape_cast %23 : vector<1x128x128xbf16> to vector<128x128xbf16>
    %cst_20 = arith.constant dense<0.000000e+00> : vector<8x128xf32>
    %25 = tpu.matmul %22, %24, %cst_20 {dimension_numbers = #tpu.dot_dimension_numbers<[1], [0], [0], [1], [0, 0, 1, 1], [], []>} : vector<8x128xbf16>, vector<128x128xbf16>, vector<8x128xf32> -> vector<8x128xf32>
    %26 = arith.addf %21, %25 : vector<8x128xf32>
    %c2_21 = arith.constant 2 : index
    %c0_22 = arith.constant 0 : index
    %c0_23 = arith.constant 0 : index
    %27 = vector.load %arg6[%c2_21, %c0_22, %c0_23] : memref<6x1x128xf32, #tpu.memory_space<vmem>>, vector<1x1x128xf32>
    %28 = vector.shape_cast %27 : vector<1x1x128xf32> to vector<1x128xf32>
    %29 = vector.broadcast %28 : vector<1x128xf32> to vector<8x128xf32>
    %30 = arith.addf %26, %29 : vector<8x128xf32>
    %cst_24 = arith.constant 0.000000e+00 : f32
    %31 = vector.broadcast %cst_24 : f32 to vector<8x128xf32>
    %32 = arith.maximumf %30, %31 : vector<8x128xf32>
    %33 = arith.truncf %32 : vector<8x128xf32> to vector<8x128xbf16>
    %c4 = arith.constant 4 : index
    %c0_25 = arith.constant 0 : index
    %c0_26 = arith.constant 0 : index
    %34 = vector.load %arg5[%c4, %c0_25, %c0_26] : memref<7x128x128xbf16, #tpu.memory_space<vmem>>, vector<1x128x128xbf16>
    %35 = vector.shape_cast %34 : vector<1x128x128xbf16> to vector<128x128xbf16>
    %cst_27 = arith.constant dense<0.000000e+00> : vector<8x128xf32>
    %36 = tpu.matmul %33, %35, %cst_27 {dimension_numbers = #tpu.dot_dimension_numbers<[1], [0], [0], [1], [0, 0, 1, 1], [], []>} : vector<8x128xbf16>, vector<128x128xbf16>, vector<8x128xf32> -> vector<8x128xf32>
    %c3_28 = arith.constant 3 : index
    %c0_29 = arith.constant 0 : index
    %c0_30 = arith.constant 0 : index
    %37 = vector.load %arg6[%c3_28, %c0_29, %c0_30] : memref<6x1x128xf32, #tpu.memory_space<vmem>>, vector<1x1x128xf32>
    %38 = vector.shape_cast %37 : vector<1x1x128xf32> to vector<1x128xf32>
    %39 = vector.broadcast %38 : vector<1x128xf32> to vector<8x128xf32>
    %40 = arith.addf %36, %39 : vector<8x128xf32>
    %cst_31 = arith.constant 0.000000e+00 : f32
    %41 = vector.broadcast %cst_31 : f32 to vector<8x128xf32>
    %42 = arith.maximumf %40, %41 : vector<8x128xf32>
    %c0_32 = arith.constant 0 : index
    %c0_33 = arith.constant 0 : index
    %43 = vector.load %arg7[%c0_32, %c0_33] : memref<8x128xf32, #tpu.memory_space<vmem>>, vector<8x128xf32>
    tpu.vector_store %arg7[%c0_32, %c0_33], %42 {strides = array<i32>} : memref<8x128xf32, #tpu.memory_space<vmem>>, vector<8x128xf32>,
    %c0_34 = arith.constant 0 : index
    %c0_35 = arith.constant 0 : index
    %44 = vector.load %arg3[%c0_34, %c0_35] : memref<8x128xf32, #tpu.memory_space<vmem>>, vector<8x128xf32>
    %c0_36 = arith.constant 0 : index
    %c0_37 = arith.constant 0 : index
    %45 = vector.load %arg4[%c0_36, %c0_37] : memref<8x128xf32, #tpu.memory_space<vmem>>, vector<8x128xf32>
    %46 = arith.mulf %45, %44 : vector<8x128xf32>
    %47 = tpu.concatenate %44, %46 in 0 : vector<8x128xf32>, vector<8x128xf32> -> vector<16x128xf32>
    %48 = arith.truncf %47 : vector<16x128xf32> to vector<16x128xbf16>
    %c5 = arith.constant 5 : index
    %c0_38 = arith.constant 0 : index
    %c0_39 = arith.constant 0 : index
    %49 = vector.load %arg5[%c5, %c0_38, %c0_39] : memref<7x128x128xbf16, #tpu.memory_space<vmem>>, vector<1x128x128xbf16>
    %50 = vector.shape_cast %49 : vector<1x128x128xbf16> to vector<128x128xbf16>
    %cst_40 = arith.constant dense<0.000000e+00> : vector<16x128xf32>
    %51 = tpu.matmul %48, %50, %cst_40 {dimension_numbers = #tpu.dot_dimension_numbers<[1], [0], [0], [1], [0, 0, 1, 1], [], []>} : vector<16x128xbf16>, vector<128x128xbf16>, vector<16x128xf32> -> vector<16x128xf32>
    %c4_41 = arith.constant 4 : index
    %c0_42 = arith.constant 0 : index
    %c0_43 = arith.constant 0 : index
    %52 = vector.load %arg6[%c4_41, %c0_42, %c0_43] : memref<6x1x128xf32, #tpu.memory_space<vmem>>, vector<1x1x128xf32>
    %53 = vector.shape_cast %52 : vector<1x1x128xf32> to vector<1x128xf32>
    %54 = vector.broadcast %53 : vector<1x128xf32> to vector<16x128xf32>
    %55 = arith.addf %51, %54 : vector<16x128xf32>
    %cst_44 = arith.constant 0.000000e+00 : f32
    %56 = vector.broadcast %cst_44 : f32 to vector<16x128xf32>
    %57 = arith.maximumf %55, %56 : vector<16x128xf32>
    %58 = arith.truncf %57 : vector<16x128xf32> to vector<16x128xbf16>
    %c6 = arith.constant 6 : index
    %c0_45 = arith.constant 0 : index
    %c0_46 = arith.constant 0 : index
    %59 = vector.load %arg5[%c6, %c0_45, %c0_46] : memref<7x128x128xbf16, #tpu.memory_space<vmem>>, vector<1x128x128xbf16>
    %60 = vector.shape_cast %59 : vector<1x128x128xbf16> to vector<128x128xbf16>
    %cst_47 = arith.constant dense<0.000000e+00> : vector<16x128xf32>
    %61 = tpu.matmul %58, %60, %cst_47 {dimension_numbers = #tpu.dot_dimension_numbers<[1], [0], [0], [1], [0, 0, 1, 1], [], []>} : vector<16x128xbf16>, vector<128x128xbf16>, vector<16x128xf32> -> vector<16x128xf32>
    %c5_48 = arith.constant 5 : index
    %c0_49 = arith.constant 0 : index
    %c0_50 = arith.constant 0 : index
    %62 = vector.load %arg6[%c5_48, %c0_49, %c0_50] : memref<6x1x128xf32, #tpu.memory_space<vmem>>, vector<1x1x128xf32>
    %63 = vector.shape_cast %62 : vector<1x1x128xf32> to vector<1x128xf32>
    %64 = vector.broadcast %63 : vector<1x128xf32> to vector<16x128xf32>
    %65 = arith.addf %61, %64 : vector<16x128xf32>
    %cst_51 = arith.constant 0.000000e+00 : f32
    %66 = vector.broadcast %cst_51 : f32 to vector<16x128xf32>
    %67 = arith.maximumf %65, %66 : vector<16x128xf32>
    %c0_52 = arith.constant 0 : index
    %c0_53 = arith.constant 0 : index
    %68 = vector.load %arg8[%c0_52, %c0_53] : memref<16x128xf32, #tpu.memory_space<vmem>>, vector<16x128xf32>
    tpu.vector_store %arg8[%c0_52, %c0_53], %67 {strides = array<i32>} : memref<16x128xf32, #tpu.memory_space<vmem>>, vector<16x128xf32>,
    return
  }
  func.func @transform_0(%arg0: i32) -> (i32, i32) {
    %c0_i32 = arith.constant 0 : i32
    %c0_i32_0 = arith.constant 0 : i32
    %c0_i32_1 = arith.constant 0 : i32
    return %c0_i32, %c0_i32_0 : i32, i32
  }
  func.func @transform_1(%arg0: i32) -> (i32, i32) {
    %c0_i32 = arith.constant 0 : i32
    %c0_i32_0 = arith.constant 0 : i32
    %c0_i32_1 = arith.constant 0 : i32
    return %c0_i32, %c0_i32_0 : i32, i32
  }
  func.func @transform_2(%arg0: i32) -> (i32, i32) {
    %c0_i32 = arith.constant 0 : i32
    %c0_i32_0 = arith.constant 0 : i32
    %c0_i32_1 = arith.constant 0 : i32
    return %c0_i32, %c0_i32_0 : i32, i32
  }
  func.func @transform_3(%arg0: i32) -> (i32, i32) {
    %c0_i32 = arith.constant 0 : i32
    %c0_i32_0 = arith.constant 0 : i32
    %c0_i32_1 = arith.constant 0 : i32
    return %c0_i32, %c0_i32_0 : i32, i32
  }
  func.func @transform_4(%arg0: i32) -> (i32, i32, i32) {
    %c0_i32 = arith.constant 0 : i32
    %c0_i32_0 = arith.constant 0 : i32
    %c0_i32_1 = arith.constant 0 : i32
    %c0_i32_2 = arith.constant 0 : i32
    return %c0_i32, %c0_i32_0, %c0_i32_1 : i32, i32, i32
  }
  func.func @transform_5(%arg0: i32) -> (i32, i32, i32) {
    %c0_i32 = arith.constant 0 : i32
    %c0_i32_0 = arith.constant 0 : i32
    %c0_i32_1 = arith.constant 0 : i32
    %c0_i32_2 = arith.constant 0 : i32
    return %c0_i32, %c0_i32_0, %c0_i32_1 : i32, i32, i32
  }
  func.func @transform_6(%arg0: i32) -> (i32, i32) {
    %c0_i32 = arith.constant 0 : i32
    %c0_i32_0 = arith.constant 0 : i32
    %c0_i32_1 = arith.constant 0 : i32
    return %c0_i32, %c0_i32_0 : i32, i32
  }
  func.func @transform_7(%arg0: i32) -> (i32, i32) {
    %c0_i32 = arith.constant 0 : i32
    %c0_i32_0 = arith.constant 0 : i32
    %c0_i32_1 = arith.constant 0 : i32
    return %c0_i32, %c0_i32_0 : i32, i32
  }
}

</mosaic_0001>

<llo_original>
// kernel: nade_mlp_forward_fused.1
$region0: #{nade_mlp_forward_fused.1}
  #allocation0 [shape = 'u32[]', space=smem, size = 0x4, offset = 0x4, fixed_abs, tag = 'smem constant byte address 0x4 - core index']
  #allocation1 [shape = 'u32[144,128]{1,0:T(1,128)}', space=vmem, size = 0x12000, scoped, tag = 'internal scratch']
  %s0 = inlined_call_operand.vmem [shape: f32[8,128], index: 0, kind: input, shape index: {}]
  %s1 = inlined_call_operand.vmem [shape: f32[8,128], index: 1, kind: input, shape index: {}]
  %s2 = inlined_call_operand.vmem [shape: f32[8,128], index: 2, kind: input, shape index: {}]
  %s3 = inlined_call_operand.vmem [shape: f32[8,128], index: 3, kind: input, shape index: {}]
  %s4 = inlined_call_operand.hbm [shape: bf16[7,128,128], index: 4, kind: input, shape index: {}]
  %s5 = inlined_call_operand.vmem [shape: f32[6,1,128], index: 5, kind: input, shape index: {}]
  %s6 = inlined_call_operand.hbm [shape: f32[8,128], index: 6, kind: output, shape index: {0}]
  %s7 = inlined_call_operand.hbm [shape: f32[16,128], index: 7, kind: output, shape index: {1}]
  %8 = xla_tuple %s6, %s7
  %s9 = sld [smem:[#allocation0]]
  $region46: #{nade_mlp_forward_fused.1} parent=0
    _
  %s11 = ssub.s32 1, %s9
  %s12 = scalar_select 0, %s11, %s9
  $region1: #{nade_mlp_forward_fused.1} parent=0
    #allocation2 [shape = 'u8[229376]{0}', space=vmem, size = 0x38000, scoped, tag = 'input window, operand 4, single buffered']
    #allocation3 [shape = 's32[1]{0}', space=sflag, size = 0x4, scoped, tag = 'scoped memory for nade_mlp_forward_fused.1']
    #allocation4 [shape = 's32[1]{0}', space=sflag, size = 0x4, scoped, tag = 'scoped memory for nade_mlp_forward_fused.1']
    #allocation5 [shape = 'u8[4096]{0}', space=vmem, size = 0x1000, scoped, tag = 'output window, operand 0, single buffered']
    #allocation6 [shape = 'u8[8192]{0}', space=vmem, size = 0x2000, scoped, tag = 'output window, operand 1, single buffered']
    #allocation7 [shape = 's32[1]{0}', space=sflag, size = 0x4, scoped, tag = 'scoped memory for nade_mlp_forward_fused.1']
    %13 = vsyncpa [#allocation3], 0
    %14 = vsyncpa [#allocation4], 0
    %15 = vsyncpa [#allocation7], 0
    // Predicated region
    $region2: #{nade_mlp_forward_fused.1} parent=1 // pred_check
      _
    $region3: #{nade_mlp_forward_fused.1} parent=1 // pred_check_branch
      %17 = sbr.rel (0) target = $region5
    $region4: #{nade_mlp_forward_fused.1} parent=1 // pred_region
      _
    $region5: #{nade_mlp_forward_fused.1} parent=1 // pred_fallthru
      _
    // Predicated region
    $region6: #{nade_mlp_forward_fused.1} parent=1 // pred_check
      _
    $region7: #{nade_mlp_forward_fused.1} parent=1 // pred_check_branch
      %19 = sbr.rel (0) target = $region9
    $region8: #{nade_mlp_forward_fused.1} parent=1 // pred_region
      _
    $region9: #{nade_mlp_forward_fused.1} parent=1 // pred_fallthru
      _
    // Predicated region
    $region10: #{nade_mlp_forward_fused.1} parent=1 // pred_check
      _
    $region11: #{nade_mlp_forward_fused.1} parent=1 // pred_check_branch
      %21 = sbr.rel (0) target = $region13
    $region12: #{nade_mlp_forward_fused.1} parent=1 // pred_region
      _
    $region13: #{nade_mlp_forward_fused.1} parent=1 // pred_fallthru
      _
    // Predicated region
    $region14: #{nade_mlp_forward_fused.1} parent=1 // pred_check
      _
    $region15: #{nade_mlp_forward_fused.1} parent=1 // pred_check_branch
      %23 = sbr.rel (0) target = $region17
    $region16: #{nade_mlp_forward_fused.1} parent=1 // pred_region
      _
    $region17: #{nade_mlp_forward_fused.1} parent=1 // pred_fallthru
      _
    // Predicated region
    $region18: #{nade_mlp_forward_fused.1} parent=1 // pred_check
      _
    $region19: #{nade_mlp_forward_fused.1} parent=1 // pred_check_branch
      %25 = sbr.rel (0) target = $region21
    $region20: #{nade_mlp_forward_fused.1} parent=1 // pred_region
      %s27 = ssub.s32 7168, 7168
      %28 = vsyncadd [#allocation3], %s27
      %s29 = sshll.u32 [#allocation2], 4
      %s30 = int_to_ptr.vmem [resolvable:$true] %s29
      %35 = dma.hbm_to_vmem [thread:$0]  %s4, 7168, %s30, [#allocation3], 64, 64, 4
    $region21: #{nade_mlp_forward_fused.1} parent=1 // pred_fallthru
      _
    // Predicated region
    $region22: #{nade_mlp_forward_fused.1} parent=1 // pred_check
      _
    $region23: #{nade_mlp_forward_fused.1} parent=1 // pred_check_branch
      %37 = sbr.rel (0) target = $region25
    $region24: #{nade_mlp_forward_fused.1} parent=1 // pred_region
      _
    $region25: #{nade_mlp_forward_fused.1} parent=1 // pred_fallthru
      _
    // Predicated region
    $region26: #{nade_mlp_forward_fused.1} parent=1 // pred_check
      _
    $region27: #{nade_mlp_forward_fused.1} parent=1 // pred_check_branch
      %39 = sbr.rel (0) target = $region29
    $region28: #{nade_mlp_forward_fused.1} parent=1 // pred_region
      %40 = dma.done [#allocation3], 7168
    $region29: #{nade_mlp_forward_fused.1} parent=1 // pred_fallthru
      _
    %v42 = vld [vmem:[%s0] sm:$0xff]
    %v43 = vpack.c.bf16 %v42, %v42
    %v44 = vld [vmem:[#allocation2] sm:$0xf]
    %v45 = vld [vmem:[#allocation2 + $0x4] sm:$0xf]
    %v46 = vld [vmem:[#allocation2 + $0x8] sm:$0xf]
    %v47 = vld [vmem:[#allocation2 + $0xc] sm:$0xf]
    %v48 = vld [vmem:[#allocation2 + $0x10] sm:$0xf]
    %v49 = vld [vmem:[#allocation2 + $0x14] sm:$0xf]
    %v50 = vld [vmem:[#allocation2 + $0x18] sm:$0xf]
    %v51 = vld [vmem:[#allocation2 + $0x1c] sm:$0xf]
    %v52 = vld [vmem:[#allocation2 + $0x20] sm:$0xf]
    %v53 = vld [vmem:[#allocation2 + $0x24] sm:$0xf]
    %v54 = vld [vmem:[#allocation2 + $0x28] sm:$0xf]
    %v55 = vld [vmem:[#allocation2 + $0x2c] sm:$0xf]
    %v56 = vld [vmem:[#allocation2 + $0x30] sm:$0xf]
    %v57 = vld [vmem:[#allocation2 + $0x34] sm:$0xf]
    %v58 = vld [vmem:[#allocation2 + $0x38] sm:$0xf]
    %v59 = vld [vmem:[#allocation2 + $0x3c] sm:$0xf]
    %v60 = vld [vmem:[%s5] sm:$0x1]
    %v62 = vlaneseq
    %v63 = vshrl.u32 %v62, 7
    %v64 = vsub.s32 0, %v63
    %v65 = vrot.slane %v60, %v64
    %v83 = vunpack.c.l.b16 %v44
    %v84 = vunpack.c.l.b16 %v45
    %v85 = vunpack.c.l.b16 %v46
    %v86 = vunpack.c.l.b16 %v47
    %v87 = vunpack.c.l.b16 %v48
    %v88 = vunpack.c.l.b16 %v49
    %v89 = vunpack.c.l.b16 %v50
    %v90 = vunpack.c.l.b16 %v51
    %v91 = vunpack.c.l.b16 %v52
    %v92 = vunpack.c.l.b16 %v53
    %v93 = vunpack.c.l.b16 %v54
    %v94 = vunpack.c.l.b16 %v55
    %v95 = vunpack.c.l.b16 %v56
    %v96 = vunpack.c.l.b16 %v57
    %v97 = vunpack.c.l.b16 %v58
    %v98 = vunpack.c.l.b16 %v59
    %v99 = vpack.c.b16 %v84, %v83
    %v100 = vpack.c.b16 %v86, %v85
    %v101 = vpack.c.b16 %v88, %v87
    %v102 = vpack.c.b16 %v90, %v89
    %v103 = vpack.c.b16 %v92, %v91
    %v104 = vpack.c.b16 %v94, %v93
    %v105 = vpack.c.b16 %v96, %v95
    %v106 = vpack.c.b16 %v98, %v97
    %115 = vmatprep.subr.bf16.mxu0 0
    %116 = vmatpush1.bf16.msra.mxu0 %v106
    %117 = vmatprep.subr.bf16.mxu0 0
    %118 = vmatpush1.bf16.msra.mxu0 %v105
    %119 = vmatprep.subr.bf16.mxu0 0
    %120 = vmatpush1.bf16.msra.mxu0 %v104
    %121 = vmatprep.subr.bf16.mxu0 0
    %122 = vmatpush1.bf16.msra.mxu0 %v103
    %123 = vmatprep.subr.bf16.mxu0 0
    %124 = vmatpush1.bf16.msra.mxu0 %v102
    %125 = vmatprep.subr.bf16.mxu0 0
    %126 = vmatpush1.bf16.msra.mxu0 %v101
    %127 = vmatprep.subr.bf16.mxu0 0
    %128 = vmatpush1.bf16.msra.mxu0 %v100
    %129 = vmatprep.subr.bf16.mxu0 0
    %130 = vmatpush1.bf16.msra.mxu0 %v99
    %131 = vmatprep.subr.bf16.mxu0 0
    %132 = vmatpush2.bf16.msra.mxu0 0
    %133 = vmatprep.subr.bf16.mxu0 0
    %134 = vmatpush2.bf16.msra.mxu0 0
    %135 = vmatprep.subr.bf16.mxu0 0
    %136 = vmatpush2.bf16.msra.mxu0 0
    %137 = vmatprep.subr.bf16.mxu0 0
    %138 = vmatpush2.bf16.msra.mxu0 0
    %139 = vmatprep.subr.bf16.mxu0 0
    %140 = vmatpush2.bf16.msra.mxu0 0
    %141 = vmatprep.subr.bf16.mxu0 0
    %142 = vmatpush2.bf16.msra.mxu0 0
    %143 = vmatprep.subr.bf16.mxu0 0
    %144 = vmatpush2.bf16.msra.mxu0 0
    %145 = vmatprep.subr.bf16.mxu0 0
    %146 = vmatpush2.bf16.msra.mxu0 0
    %147 = vmatprep.mubr.bf16.mxu0 0
    %148 = vmatmul.mubr.bf16.gmra.mxu0 %v43
    %v149 = vpop.f32.mrf.mxu0
    %v150 = vadd.f32 %v65, %v149
    %v151 = vpop.f32.mrf.mxu0
    %v152 = vpop.f32.mrf.mxu0
    %v153 = vpop.f32.mrf.mxu0
    %154 = vdwg.mxu0
    %v155 = vld [vmem:[%s1] sm:$0xff]
    %v156 = vpack.c.bf16 %v155, %v155
    %s157 = scalar_lea.vmem [#allocation2], 64
    %v158 = vld [vmem:[%s157] sm:$0xf]
    %v159 = vld [vmem:[%s157 + $0x4] sm:$0xf]
    %v160 = vld [vmem:[%s157 + $0x8] sm:$0xf]
    %v161 = vld [vmem:[%s157 + $0xc] sm:$0xf]
    %v162 = vld [vmem:[%s157 + $0x10] sm:$0xf]
    %v163 = vld [vmem:[%s157 + $0x14] sm:$0xf]
    %v164 = vld [vmem:[%s157 + $0x18] sm:$0xf]
    %v165 = vld [vmem:[%s157 + $0x1c] sm:$0xf]
    %v166 = vld [vmem:[%s157 + $0x20] sm:$0xf]
    %v167 = vld [vmem:[%s157 + $0x24] sm:$0xf]
    %v168 = vld [vmem:[%s157 + $0x28] sm:$0xf]
    %v169 = vld [vmem:[%s157 + $0x2c] sm:$0xf]
    %v170 = vld [vmem:[%s157 + $0x30] sm:$0xf]
    %v171 = vld [vmem:[%s157 + $0x34] sm:$0xf]
    %v172 = vld [vmem:[%s157 + $0x38] sm:$0xf]
    %v173 = vld [vmem:[%s157 + $0x3c] sm:$0xf]
    %s174 = scalar_lea.vmem %s5, 1
    %v175 = vld [vmem:[%s174] sm:$0x1]
    %v177 = vlaneseq
    %v178 = vshrl.u32 %v177, 7
    %v179 = vsub.s32 0, %v178
    %v180 = vrot.slane %v175, %v179
    %v198 = vunpack.c.l.b16 %v158
    %v199 = vunpack.c.l.b16 %v159
    %v200 = vunpack.c.l.b16 %v160
    %v201 = vunpack.c.l.b16 %v161
    %v202 = vunpack.c.l.b16 %v162
    %v203 = vunpack.c.l.b16 %v163
    %v204 = vunpack.c.l.b16 %v164
    %v205 = vunpack.c.l.b16 %v165
    %v206 = vunpack.c.l.b16 %v166
    %v207 = vunpack.c.l.b16 %v167
    %v208 = vunpack.c.l.b16 %v168
    %v209 = vunpack.c.l.b16 %v169
    %v210 = vunpack.c.l.b16 %v170
    %v211 = vunpack.c.l.b16 %v171
    %v212 = vunpack.c.l.b16 %v172
    %v213 = vunpack.c.l.b16 %v173
    %v214 = vpack.c.b16 %v199, %v198
    %v215 = vpack.c.b16 %v201, %v200
    %v216 = vpack.c.b16 %v203, %v202
    %v217 = vpack.c.b16 %v205, %v204
    %v218 = vpack.c.b16 %v207, %v206
    %v219 = vpack.c.b16 %v209, %v208
    %v220 = vpack.c.b16 %v211, %v210
    %v221 = vpack.c.b16 %v213, %v212
    %230 = vmatprep.subr.bf16.mxu0 0
    %231 = vmatpush1.bf16.msra.mxu0 %v221
    %232 = vmatprep.subr.bf16.mxu0 0
    %233 = vmatpush1.bf16.msra.mxu0 %v220
    %234 = vmatprep.subr.bf16.mxu0 0
    %235 = vmatpush1.bf16.msra.mxu0 %v219
    %236 = vmatprep.subr.bf16.mxu0 0
    %237 = vmatpush1.bf16.msra.mxu0 %v218
    %238 = vmatprep.subr.bf16.mxu0 0
    %239 = vmatpush1.bf16.msra.mxu0 %v217
    %240 = vmatprep.subr.bf16.mxu0 0
    %241 = vmatpush1.bf16.msra.mxu0 %v216
    %242 = vmatprep.subr.bf16.mxu0 0
    %243 = vmatpush1.bf16.msra.mxu0 %v215
    %244 = vmatprep.subr.bf16.mxu0 0
    %245 = vmatpush1.bf16.msra.mxu0 %v214
    %246 = vmatprep.subr.bf16.mxu0 0
    %247 = vmatpush2.bf16.msra.mxu0 0
    %248 = vmatprep.subr.bf16.mxu0 0
    %249 = vmatpush2.bf16.msra.mxu0 0
    %250 = vmatprep.subr.bf16.mxu0 0
    %251 = vmatpush2.bf16.msra.mxu0 0
    %252 = vmatprep.subr.bf16.mxu0 0
    %253 = vmatpush2.bf16.msra.mxu0 0
    %254 = vmatprep.subr.bf16.mxu0 0
    %255 = vmatpush2.bf16.msra.mxu0 0
    %256 = vmatprep.subr.bf16.mxu0 0
    %257 = vmatpush2.bf16.msra.mxu0 0
    %258 = vmatprep.subr.bf16.mxu0 0
    %259 = vmatpush2.bf16.msra.mxu0 0
    %260 = vmatprep.subr.bf16.mxu0 0
    %261 = vmatpush2.bf16.msra.mxu0 0
    %262 = vmatprep.mubr.bf16.mxu0 0
    %263 = vmatmul.mubr.bf16.gmra.mxu0 %v156
    %v264 = vpop.f32.mrf.mxu0
    %v265 = vadd.f32 %v180, %v264
    %v266 = vpop.f32.mrf.mxu0
    %v267 = vpop.f32.mrf.mxu0
    %v268 = vpop.f32.mrf.mxu0
    %269 = vdwg.mxu0
    %v270 = vpack.c.bf16 %v150, %v150
    %s271 = scalar_lea.vmem [#allocation2], 128
    %v272 = vld [vmem:[%s271] sm:$0xf]
    %v273 = vld [vmem:[%s271 + $0x4] sm:$0xf]
    %v274 = vld [vmem:[%s271 + $0x8] sm:$0xf]
    %v275 = vld [vmem:[%s271 + $0xc] sm:$0xf]
    %v276 = vld [vmem:[%s271 + $0x10] sm:$0xf]
    %v277 = vld [vmem:[%s271 + $0x14] sm:$0xf]
    %v278 = vld [vmem:[%s271 + $0x18] sm:$0xf]
    %v279 = vld [vmem:[%s271 + $0x1c] sm:$0xf]
    %v280 = vld [vmem:[%s271 + $0x20] sm:$0xf]
    %v281 = vld [vmem:[%s271 + $0x24] sm:$0xf]
    %v282 = vld [vmem:[%s271 + $0x28] sm:$0xf]
    %v283 = vld [vmem:[%s271 + $0x2c] sm:$0xf]
    %v284 = vld [vmem:[%s271 + $0x30] sm:$0xf]
    %v285 = vld [vmem:[%s271 + $0x34] sm:$0xf]
    %v286 = vld [vmem:[%s271 + $0x38] sm:$0xf]
    %v287 = vld [vmem:[%s271 + $0x3c] sm:$0xf]
    %v288 = vpack.c.bf16 %v265, %v265
    %s289 = scalar_lea.vmem [#allocation2], 192
    %v290 = vld [vmem:[%s289] sm:$0xf]
    %v291 = vld [vmem:[%s289 + $0x4] sm:$0xf]
    %v292 = vld [vmem:[%s289 + $0x8] sm:$0xf]
    %v293 = vld [vmem:[%s289 + $0xc] sm:$0xf]
    %v294 = vld [vmem:[%s289 + $0x10] sm:$0xf]
    %v295 = vld [vmem:[%s289 + $0x14] sm:$0xf]
    %v296 = vld [vmem:[%s289 + $0x18] sm:$0xf]
    %v297 = vld [vmem:[%s289 + $0x1c] sm:$0xf]
    %v298 = vld [vmem:[%s289 + $0x20] sm:$0xf]
    %v299 = vld [vmem:[%s289 + $0x24] sm:$0xf]
    %v300 = vld [vmem:[%s289 + $0x28] sm:$0xf]
    %v301 = vld [vmem:[%s289 + $0x2c] sm:$0xf]
    %v302 = vld [vmem:[%s289 + $0x30] sm:$0xf]
    %v303 = vld [vmem:[%s289 + $0x34] sm:$0xf]
    %v304 = vld [vmem:[%s289 + $0x38] sm:$0xf]
    %v305 = vld [vmem:[%s289 + $0x3c] sm:$0xf]
    %v322 = vunpack.c.l.b16 %v290
    %v323 = vunpack.c.l.b16 %v291
    %v324 = vunpack.c.l.b16 %v292
    %v325 = vunpack.c.l.b16 %v293
    %v326 = vunpack.c.l.b16 %v294
    %v327 = vunpack.c.l.b16 %v295
    %v328 = vunpack.c.l.b16 %v296
    %v329 = vunpack.c.l.b16 %v297
    %v330 = vunpack.c.l.b16 %v298
    %v331 = vunpack.c.l.b16 %v299
    %v332 = vunpack.c.l.b16 %v300
    %v333 = vunpack.c.l.b16 %v301
    %v334 = vunpack.c.l.b16 %v302
    %v335 = vunpack.c.l.b16 %v303
    %v336 = vunpack.c.l.b16 %v304
    %v337 = vunpack.c.l.b16 %v305
    %v338 = vpack.c.b16 %v323, %v322
    %v339 = vpack.c.b16 %v325, %v324
    %v340 = vpack.c.b16 %v327, %v326
    %v341 = vpack.c.b16 %v329, %v328
    %v342 = vpack.c.b16 %v331, %v330
    %v343 = vpack.c.b16 %v333, %v332
    %v344 = vpack.c.b16 %v335, %v334
    %v345 = vpack.c.b16 %v337, %v336
    %354 = vmatprep.subr.bf16.mxu0 0
    %355 = vmatpush1.bf16.msra.mxu0 %v345
    %356 = vmatprep.subr.bf16.mxu0 0
    %357 = vmatpush1.bf16.msra.mxu0 %v344
    %358 = vmatprep.subr.bf16.mxu0 0
    %359 = vmatpush1.bf16.msra.mxu0 %v343
    %360 = vmatprep.subr.bf16.mxu0 0
    %361 = vmatpush1.bf16.msra.mxu0 %v342
    %362 = vmatprep.subr.bf16.mxu0 0
    %363 = vmatpush1.bf16.msra.mxu0 %v341
    %364 = vmatprep.subr.bf16.mxu0 0
    %365 = vmatpush1.bf16.msra.mxu0 %v340
    %366 = vmatprep.subr.bf16.mxu0 0
    %367 = vmatpush1.bf16.msra.mxu0 %v339
    %368 = vmatprep.subr.bf16.mxu0 0
    %369 = vmatpush1.bf16.msra.mxu0 %v338
    %370 = vmatprep.subr.bf16.mxu0 0
    %371 = vmatpush2.bf16.msra.mxu0 0
    %372 = vmatprep.subr.bf16.mxu0 0
    %373 = vmatpush2.bf16.msra.mxu0 0
    %374 = vmatprep.subr.bf16.mxu0 0
    %375 = vmatpush2.bf16.msra.mxu0 0
    %376 = vmatprep.subr.bf16.mxu0 0
    %377 = vmatpush2.bf16.msra.mxu0 0
    %378 = vmatprep.subr.bf16.mxu0 0
    %379 = vmatpush2.bf16.msra.mxu0 0
    %380 = vmatprep.subr.bf16.mxu0 0
    %381 = vmatpush2.bf16.msra.mxu0 0
    %382 = vmatprep.subr.bf16.mxu0 0
    %383 = vmatpush2.bf16.msra.mxu0 0
    %384 = vmatprep.subr.bf16.mxu0 0
    %385 = vmatpush2.bf16.msra.mxu0 0
    %386 = vmatprep.mubr.bf16.mxu0 0
    %387 = vmatmul.mubr.bf16.gmra.mxu0 %v288
    %v388 = vpop.f32.mrf.mxu0
    %v389 = vadd.f32 0.0, %v388
    %v390 = vpop.f32.mrf.mxu0
    %v391 = vpop.f32.mrf.mxu0
    %v392 = vpop.f32.mrf.mxu0
    %393 = vdwg.mxu0
    %v410 = vunpack.c.l.b16 %v272
    %v411 = vunpack.c.l.b16 %v273
    %v412 = vunpack.c.l.b16 %v274
    %v413 = vunpack.c.l.b16 %v275
    %v414 = vunpack.c.l.b16 %v276
    %v415 = vunpack.c.l.b16 %v277
    %v416 = vunpack.c.l.b16 %v278
    %v417 = vunpack.c.l.b16 %v279
    %v418 = vunpack.c.l.b16 %v280
    %v419 = vunpack.c.l.b16 %v281
    %v420 = vunpack.c.l.b16 %v282
    %v421 = vunpack.c.l.b16 %v283
    %v422 = vunpack.c.l.b16 %v284
    %v423 = vunpack.c.l.b16 %v285
    %v424 = vunpack.c.l.b16 %v286
    %v425 = vunpack.c.l.b16 %v287
    %v426 = vpack.c.b16 %v411, %v410
    %v427 = vpack.c.b16 %v413, %v412
    %v428 = vpack.c.b16 %v415, %v414
    %v429 = vpack.c.b16 %v417, %v416
    %v430 = vpack.c.b16 %v419, %v418
    %v431 = vpack.c.b16 %v421, %v420
    %v432 = vpack.c.b16 %v423, %v422
    %v433 = vpack.c.b16 %v425, %v424
    %442 = vmatprep.subr.bf16.mxu0 0
    %443 = vmatpush1.bf16.msra.mxu0 %v433
    %444 = vmatprep.subr.bf16.mxu0 0
    %445 = vmatpush1.bf16.msra.mxu0 %v432
    %446 = vmatprep.subr.bf16.mxu0 0
    %447 = vmatpush1.bf16.msra.mxu0 %v431
    %448 = vmatprep.subr.bf16.mxu0 0
    %449 = vmatpush1.bf16.msra.mxu0 %v430
    %450 = vmatprep.subr.bf16.mxu0 0
    %451 = vmatpush1.bf16.msra.mxu0 %v429
    %452 = vmatprep.subr.bf16.mxu0 0
    %453 = vmatpush1.bf16.msra.mxu0 %v428
    %454 = vmatprep.subr.bf16.mxu0 0
    %455 = vmatpush1.bf16.msra.mxu0 %v427
    %456 = vmatprep.subr.bf16.mxu0 0
    %457 = vmatpush1.bf16.msra.mxu0 %v426
    %458 = vmatprep.subr.bf16.mxu0 0
    %459 = vmatpush2.bf16.msra.mxu0 0
    %460 = vmatprep.subr.bf16.mxu0 0
    %461 = vmatpush2.bf16.msra.mxu0 0
    %462 = vmatprep.subr.bf16.mxu0 0
    %463 = vmatpush2.bf16.msra.mxu0 0
    %464 = vmatprep.subr.bf16.mxu0 0
    %465 = vmatpush2.bf16.msra.mxu0 0
    %466 = vmatprep.subr.bf16.mxu0 0
    %467 = vmatpush2.bf16.msra.mxu0 0
    %468 = vmatprep.subr.bf16.mxu0 0
    %469 = vmatpush2.bf16.msra.mxu0 0
    %470 = vmatprep.subr.bf16.mxu0 0
    %471 = vmatpush2.bf16.msra.mxu0 0
    %472 = vmatprep.subr.bf16.mxu0 0
    %473 = vmatpush2.bf16.msra.mxu0 0
    %474 = vmatprep.mubr.bf16.mxu0 0
    %475 = vmatmul.mubr.bf16.gmra.mxu0 %v270
    %v476 = vpop.f32.mrf.mxu0
    %v477 = vadd.f32 %v389, %v476
    %v478 = vpop.f32.mrf.mxu0
    %v479 = vpop.f32.mrf.mxu0
    %v480 = vpop.f32.mrf.mxu0
    %481 = vdwg.mxu0
    %s482 = scalar_lea.vmem %s5, 2
    %v483 = vld [vmem:[%s482] sm:$0x1]
    %v485 = vlaneseq
    %v486 = vshrl.u32 %v485, 7
    %v487 = vsub.s32 0, %v486
    %v488 = vrot.slane %v483, %v487
    %v490 = vadd.f32 %v477, %v488
    %v491 = vmax.f32 %v490, 0.0
    %v492 = vpack.c.bf16 %v491, %v491
    %s493 = scalar_lea.vmem [#allocation2], 256
    %v494 = vld [vmem:[%s493] sm:$0xf]
    %v495 = vld [vmem:[%s493 + $0x4] sm:$0xf]
    %v496 = vld [vmem:[%s493 + $0x8] sm:$0xf]
    %v497 = vld [vmem:[%s493 + $0xc] sm:$0xf]
    %v498 = vld [vmem:[%s493 + $0x10] sm:$0xf]
    %v499 = vld [vmem:[%s493 + $0x14] sm:$0xf]
    %v500 = vld [vmem:[%s493 + $0x18] sm:$0xf]
    %v501 = vld [vmem:[%s493 + $0x1c] sm:$0xf]
    %v502 = vld [vmem:[%s493 + $0x20] sm:$0xf]
    %v503 = vld [vmem:[%s493 + $0x24] sm:$0xf]
    %v504 = vld [vmem:[%s493 + $0x28] sm:$0xf]
    %v505 = vld [vmem:[%s493 + $0x2c] sm:$0xf]
    %v506 = vld [vmem:[%s493 + $0x30] sm:$0xf]
    %v507 = vld [vmem:[%s493 + $0x34] sm:$0xf]
    %v508 = vld [vmem:[%s493 + $0x38] sm:$0xf]
    %v509 = vld [vmem:[%s493 + $0x3c] sm:$0xf]
    %s510 = scalar_lea.vmem %s5, 3
    %v511 = vld [vmem:[%s510] sm:$0x1]
    %v513 = vlaneseq
    %v514 = vshrl.u32 %v513, 7
    %v515 = vsub.s32 0, %v514
    %v516 = vrot.slane %v511, %v515
    %v534 = vunpack.c.l.b16 %v494
    %v535 = vunpack.c.l.b16 %v495
    %v536 = vunpack.c.l.b16 %v496
    %v537 = vunpack.c.l.b16 %v497
    %v538 = vunpack.c.l.b16 %v498
    %v539 = vunpack.c.l.b16 %v499
    %v540 = vunpack.c.l.b16 %v500
    %v541 = vunpack.c.l.b16 %v501
    %v542 = vunpack.c.l.b16 %v502
    %v543 = vunpack.c.l.b16 %v503
    %v544 = vunpack.c.l.b16 %v504
    %v545 = vunpack.c.l.b16 %v505
    %v546 = vunpack.c.l.b16 %v506
    %v547 = vunpack.c.l.b16 %v507
    %v548 = vunpack.c.l.b16 %v508
    %v549 = vunpack.c.l.b16 %v509
    %v550 = vpack.c.b16 %v535, %v534
    %v551 = vpack.c.b16 %v537, %v536
    %v552 = vpack.c.b16 %v539, %v538
    %v553 = vpack.c.b16 %v541, %v540
    %v554 = vpack.c.b16 %v543, %v542
    %v555 = vpack.c.b16 %v545, %v544
    %v556 = vpack.c.b16 %v547, %v546
    %v557 = vpack.c.b16 %v549, %v548
    %566 = vmatprep.subr.bf16.mxu0 0
    %567 = vmatpush1.bf16.msra.mxu0 %v557
    %568 = vmatprep.subr.bf16.mxu0 0
    %569 = vmatpush1.bf16.msra.mxu0 %v556
    %570 = vmatprep.subr.bf16.mxu0 0
    %571 = vmatpush1.bf16.msra.mxu0 %v555
    %572 = vmatprep.subr.bf16.mxu0 0
    %573 = vmatpush1.bf16.msra.mxu0 %v554
    %574 = vmatprep.subr.bf16.mxu0 0
    %575 = vmatpush1.bf16.msra.mxu0 %v553
    %576 = vmatprep.subr.bf16.mxu0 0
    %577 = vmatpush1.bf16.msra.mxu0 %v552
    %578 = vmatprep.subr.bf16.mxu0 0
    %579 = vmatpush1.bf16.msra.mxu0 %v551
    %580 = vmatprep.subr.bf16.mxu0 0
    %581 = vmatpush1.bf16.msra.mxu0 %v550
    %582 = vmatprep.subr.bf16.mxu0 0
    %583 = vmatpush2.bf16.msra.mxu0 0
    %584 = vmatprep.subr.bf16.mxu0 0
    %585 = vmatpush2.bf16.msra.mxu0 0
    %586 = vmatprep.subr.bf16.mxu0 0
    %587 = vmatpush2.bf16.msra.mxu0 0
    %588 = vmatprep.subr.bf16.mxu0 0
    %589 = vmatpush2.bf16.msra.mxu0 0
    %590 = vmatprep.subr.bf16.mxu0 0
    %591 = vmatpush2.bf16.msra.mxu0 0
    %592 = vmatprep.subr.bf16.mxu0 0
    %593 = vmatpush2.bf16.msra.mxu0 0
    %594 = vmatprep.subr.bf16.mxu0 0
    %595 = vmatpush2.bf16.msra.mxu0 0
    %596 = vmatprep.subr.bf16.mxu0 0
    %597 = vmatpush2.bf16.msra.mxu0 0
    %598 = vmatprep.mubr.bf16.mxu0 0
    %599 = vmatmul.mubr.bf16.gmra.mxu0 %v492
    %v600 = vpop.f32.mrf.mxu0
    %v601 = vadd.f32 %v516, %v600
    %v602 = vpop.f32.mrf.mxu0
    %v603 = vpop.f32.mrf.mxu0
    %v604 = vpop.f32.mrf.mxu0
    %605 = vdwg.mxu0
    %v606 = vmax.f32 %v601, 0.0
    %607 = vst [vmem:[#allocation5] sm:$0xff] %v606
    %v608 = vld [vmem:[%s2] sm:$0xff]
    %v609 = vld [vmem:[%s3] sm:$0xff]
    %v610 = vmul.f32 %v609, %v608
    %v611 = vpack.c.bf16 %v610, %v608
    %s612 = scalar_lea.vmem [#allocation2], 320
    %v613 = vld [vmem:[%s612] sm:$0xf]
    %v614 = vld [vmem:[%s612 + $0x4] sm:$0xf]
    %v615 = vld [vmem:[%s612 + $0x8] sm:$0xf]
    %v616 = vld [vmem:[%s612 + $0xc] sm:$0xf]
    %v617 = vld [vmem:[%s612 + $0x10] sm:$0xf]
    %v618 = vld [vmem:[%s612 + $0x14] sm:$0xf]
    %v619 = vld [vmem:[%s612 + $0x18] sm:$0xf]
    %v620 = vld [vmem:[%s612 + $0x1c] sm:$0xf]
    %v621 = vld [vmem:[%s612 + $0x20] sm:$0xf]
    %v622 = vld [vmem:[%s612 + $0x24] sm:$0xf]
    %v623 = vld [vmem:[%s612 + $0x28] sm:$0xf]
    %v624 = vld [vmem:[%s612 + $0x2c] sm:$0xf]
    %v625 = vld [vmem:[%s612 + $0x30] sm:$0xf]
    %v626 = vld [vmem:[%s612 + $0x34] sm:$0xf]
    %v627 = vld [vmem:[%s612 + $0x38] sm:$0xf]
    %v628 = vld [vmem:[%s612 + $0x3c] sm:$0xf]
    %s629 = scalar_lea.vmem %s5, 4
    %v630 = vld [vmem:[%s629] sm:$0x1]
    %v632 = vlaneseq
    %v633 = vshrl.u32 %v632, 7
    %v634 = vsub.s32 0, %v633
    %v635 = vrot.slane %v630, %v634
    %v653 = vunpack.c.l.b16 %v613
    %v654 = vunpack.c.l.b16 %v614
    %v655 = vunpack.c.l.b16 %v615
    %v656 = vunpack.c.l.b16 %v616
    %v657 = vunpack.c.l.b16 %v617
    %v658 = vunpack.c.l.b16 %v618
    %v659 = vunpack.c.l.b16 %v619
    %v660 = vunpack.c.l.b16 %v620
    %v661 = vunpack.c.l.b16 %v621
    %v662 = vunpack.c.l.b16 %v622
    %v663 = vunpack.c.l.b16 %v623
    %v664 = vunpack.c.l.b16 %v624
    %v665 = vunpack.c.l.b16 %v625
    %v666 = vunpack.c.l.b16 %v626
    %v667 = vunpack.c.l.b16 %v627
    %v668 = vunpack.c.l.b16 %v628
    %v669 = vpack.c.b16 %v654, %v653
    %v670 = vpack.c.b16 %v656, %v655
    %v671 = vpack.c.b16 %v658, %v657
    %v672 = vpack.c.b16 %v660, %v659
    %v673 = vpack.c.b16 %v662, %v661
    %v674 = vpack.c.b16 %v664, %v663
    %v675 = vpack.c.b16 %v666, %v665
    %v676 = vpack.c.b16 %v668, %v667
    %685 = vmatprep.subr.bf16.mxu0 0
    %686 = vmatpush1.bf16.msra.mxu0 %v676
    %687 = vmatprep.subr.bf16.mxu0 0
    %688 = vmatpush1.bf16.msra.mxu0 %v675
    %689 = vmatprep.subr.bf16.mxu0 0
    %690 = vmatpush1.bf16.msra.mxu0 %v674
    %691 = vmatprep.subr.bf16.mxu0 0
    %692 = vmatpush1.bf16.msra.mxu0 %v673
    %693 = vmatprep.subr.bf16.mxu0 0
    %694 = vmatpush1.bf16.msra.mxu0 %v672
    %695 = vmatprep.subr.bf16.mxu0 0
    %696 = vmatpush1.bf16.msra.mxu0 %v671
    %697 = vmatprep.subr.bf16.mxu0 0
    %698 = vmatpush1.bf16.msra.mxu0 %v670
    %699 = vmatprep.subr.bf16.mxu0 0
    %700 = vmatpush1.bf16.msra.mxu0 %v669
    %701 = vmatprep.subr.bf16.mxu0 0
    %702 = vmatpush2.bf16.msra.mxu0 0
    %703 = vmatprep.subr.bf16.mxu0 0
    %704 = vmatpush2.bf16.msra.mxu0 0
    %705 = vmatprep.subr.bf16.mxu0 0
    %706 = vmatpush2.bf16.msra.mxu0 0
    %707 = vmatprep.subr.bf16.mxu0 0
    %708 = vmatpush2.bf16.msra.mxu0 0
    %709 = vmatprep.subr.bf16.mxu0 0
    %710 = vmatpush2.bf16.msra.mxu0 0
    %711 = vmatprep.subr.bf16.mxu0 0
    %712 = vmatpush2.bf16.msra.mxu0 0
    %713 = vmatprep.subr.bf16.mxu0 0
    %714 = vmatpush2.bf16.msra.mxu0 0
    %715 = vmatprep.subr.bf16.mxu0 0
    %716 = vmatpush2.bf16.msra.mxu0 0
    %717 = vmatprep.mubr.bf16.mxu0 0
    %718 = vmatmul.mubr.bf16.gmra.mxu0 %v611
    %v719 = vpop.f32.mrf.mxu0
    %v720 = vadd.f32 %v635, %v719
    %v721 = vpop.f32.mrf.mxu0
    %v722 = vpop.f32.mrf.mxu0
    %v723 = vadd.f32 %v635, %v722
    %v724 = vpop.f32.mrf.mxu0
    %725 = vdwg.mxu0
    %v726 = vmax.f32 %v720, 0.0
    %v727 = vmax.f32 %v723, 0.0
    %v728 = vpack.c.bf16 %v727, %v726
    %s729 = scalar_lea.vmem [#allocation2], 384
    %v730 = vld [vmem:[%s729] sm:$0xf]
    %v731 = vld [vmem:[%s729 + $0x4] sm:$0xf]
    %v732 = vld [vmem:[%s729 + $0x8] sm:$0xf]
    %v733 = vld [vmem:[%s729 + $0xc] sm:$0xf]
    %v734 = vld [vmem:[%s729 + $0x10] sm:$0xf]
    %v735 = vld [vmem:[%s729 + $0x14] sm:$0xf]
    %v736 = vld [vmem:[%s729 + $0x18] sm:$0xf]
    %v737 = vld [vmem:[%s729 + $0x1c] sm:$0xf]
    %v738 = vld [vmem:[%s729 + $0x20] sm:$0xf]
    %v739 = vld [vmem:[%s729 + $0x24] sm:$0xf]
    %v740 = vld [vmem:[%s729 + $0x28] sm:$0xf]
    %v741 = vld [vmem:[%s729 + $0x2c] sm:$0xf]
    %v742 = vld [vmem:[%s729 + $0x30] sm:$0xf]
    %v743 = vld [vmem:[%s729 + $0x34] sm:$0xf]
    %v744 = vld [vmem:[%s729 + $0x38] sm:$0xf]
    %v745 = vld [vmem:[%s729 + $0x3c] sm:$0xf]
    %s746 = scalar_lea.vmem %s5, 5
    %v747 = vld [vmem:[%s746] sm:$0x1]
    %v749 = vlaneseq
    %v750 = vshrl.u32 %v749, 7
    %v751 = vsub.s32 0, %v750
    %v752 = vrot.slane %v747, %v751
    %v770 = vunpack.c.l.b16 %v730
    %v771 = vunpack.c.l.b16 %v731
    %v772 = vunpack.c.l.b16 %v732
    %v773 = vunpack.c.l.b16 %v733
    %v774 = vunpack.c.l.b16 %v734
    %v775 = vunpack.c.l.b16 %v735
    %v776 = vunpack.c.l.b16 %v736
    %v777 = vunpack.c.l.b16 %v737
    %v778 = vunpack.c.l.b16 %v738
    %v779 = vunpack.c.l.b16 %v739
    %v780 = vunpack.c.l.b16 %v740
    %v781 = vunpack.c.l.b16 %v741
    %v782 = vunpack.c.l.b16 %v742
    %v783 = vunpack.c.l.b16 %v743
    %v784 = vunpack.c.l.b16 %v744
    %v785 = vunpack.c.l.b16 %v745
    %v786 = vpack.c.b16 %v771, %v770
    %v787 = vpack.c.b16 %v773, %v772
    %v788 = vpack.c.b16 %v775, %v774
    %v789 = vpack.c.b16 %v777, %v776
    %v790 = vpack.c.b16 %v779, %v778
    %v791 = vpack.c.b16 %v781, %v780
    %v792 = vpack.c.b16 %v783, %v782
    %v793 = vpack.c.b16 %v785, %v784
    %802 = vmatprep.subr.bf16.mxu0 0
    %803 = vmatpush1.bf16.msra.mxu0 %v793
    %804 = vmatprep.subr.bf16.mxu0 0
    %805 = vmatpush1.bf16.msra.mxu0 %v792
    %806 = vmatprep.subr.bf16.mxu0 0
    %807 = vmatpush1.bf16.msra.mxu0 %v791
    %808 = vmatprep.subr.bf16.mxu0 0
    %809 = vmatpush1.bf16.msra.mxu0 %v790
    %810 = vmatprep.subr.bf16.mxu0 0
    %811 = vmatpush1.bf16.msra.mxu0 %v789
    %812 = vmatprep.subr.bf16.mxu0 0
    %813 = vmatpush1.bf16.msra.mxu0 %v788
    %814 = vmatprep.subr.bf16.mxu0 0
    %815 = vmatpush1.bf16.msra.mxu0 %v787
    %816 = vmatprep.subr.bf16.mxu0 0
    %817 = vmatpush1.bf16.msra.mxu0 %v786
    %818 = vmatprep.subr.bf16.mxu0 0
    %819 = vmatpush2.bf16.msra.mxu0 0
    %820 = vmatprep.subr.bf16.mxu0 0
    %821 = vmatpush2.bf16.msra.mxu0 0
    %822 = vmatprep.subr.bf16.mxu0 0
    %823 = vmatpush2.bf16.msra.mxu0 0
    %824 = vmatprep.subr.bf16.mxu0 0
    %825 = vmatpush2.bf16.msra.mxu0 0
    %826 = vmatprep.subr.bf16.mxu0 0
    %827 = vmatpush2.bf16.msra.mxu0 0
    %828 = vmatprep.subr.bf16.mxu0 0
    %829 = vmatpush2.bf16.msra.mxu0 0
    %830 = vmatprep.subr.bf16.mxu0 0
    %831 = vmatpush2.bf16.msra.mxu0 0
    %832 = vmatprep.subr.bf16.mxu0 0
    %833 = vmatpush2.bf16.msra.mxu0 0
    %834 = vmatprep.mubr.bf16.mxu0 0
    %835 = vmatmul.mubr.bf16.gmra.mxu0 %v728
    %v836 = vpop.f32.mrf.mxu0
    %v837 = vadd.f32 %v752, %v836
    %v838 = vpop.f32.mrf.mxu0
    %v839 = vpop.f32.mrf.mxu0
    %v840 = vadd.f32 %v752, %v839
    %v841 = vpop.f32.mrf.mxu0
    %842 = vdwg.mxu0
    %v843 = vmax.f32 %v837, 0.0
    %v844 = vmax.f32 %v840, 0.0
    %845 = vst [vmem:[#allocation6] sm:$0xff] %v843
    %846 = vst [vmem:[#allocation6 + $0x8] sm:$0xff] %v844
    // Predicated region
    $region30: #{nade_mlp_forward_fused.1} parent=1 // pred_check
      _
    $region31: #{nade_mlp_forward_fused.1} parent=1 // pred_check_branch
      %848 = sbr.rel (0) target = $region33
    $region32: #{nade_mlp_forward_fused.1} parent=1 // pred_region
      %s850 = ssub.s32 128, 128
      %851 = vsyncadd [#allocation4], %s850
      %s853 = sshll.u32 [#allocation5], 4
      %s854 = int_to_ptr.vmem [resolvable:$true] %s853
      %856 = dma.vmem_to_hbm [thread:$0]  %s854, 128, %s6, [#allocation4]
    $region33: #{nade_mlp_forward_fused.1} parent=1 // pred_fallthru
      _
    // Predicated region
    $region34: #{nade_mlp_forward_fused.1} parent=1 // pred_check
      _
    $region35: #{nade_mlp_forward_fused.1} parent=1 // pred_check_branch
      %858 = sbr.rel (0) target = $region37
    $region36: #{nade_mlp_forward_fused.1} parent=1 // pred_region
      %s860 = ssub.s32 256, 256
      %861 = vsyncadd [#allocation7], %s860
      %s862 = sshll.u32 [#allocation6], 4
      %s863 = int_to_ptr.vmem [resolvable:$true] %s862
      %868 = dma.vmem_to_hbm [thread:$0]  %s863, 256, %s7, [#allocation7], 128, 128, 8
    $region37: #{nade_mlp_forward_fused.1} parent=1 // pred_fallthru
      _
    // Predicated region
    $region38: #{nade_mlp_forward_fused.1} parent=1 // pred_check
      _
    $region39: #{nade_mlp_forward_fused.1} parent=1 // pred_check_branch
      %870 = sbr.rel (0) target = $region41
    $region40: #{nade_mlp_forward_fused.1} parent=1 // pred_region
      %871 = dma.done [#allocation4], 128
    $region41: #{nade_mlp_forward_fused.1} parent=1 // pred_fallthru
      _
    // Predicated region
    $region42: #{nade_mlp_forward_fused.1} parent=1 // pred_check
      _
    $region43: #{nade_mlp_forward_fused.1} parent=1 // pred_check_branch
      %873 = sbr.rel (0) target = $region45
    $region44: #{nade_mlp_forward_fused.1} parent=1 // pred_region
      %874 = dma.done [#allocation7], 256
    $region45: #{nade_mlp_forward_fused.1} parent=1 // pred_fallthru
      _
    %875 = vsyncpa [#allocation3], 1
    %876 = vsyncpa [#allocation4], 1
    %877 = vsyncpa [#allocation7], 1

</llo_original>
